<compile_context>
chip_gen: v5e
topology: v5e:2x2
jax: 0.10.0
libtpu: 0.0.40
codegen_flags: <defaults>
</compile_context>

<pallas_src>
import functools

import jax
import jax.numpy as jnp
from jax.experimental import pallas as pl
from jax.experimental.pallas import tpu as pltpu


def _round_up(x, m):
    return (x + m - 1) // m * m


def _policy_mlp_kernel(n_layers, a_dim, x_ref, w_ref, b_ref, out_ref):
    """x_ref: [TB, P] f32, w_ref: [L, P, P] bf16, b_ref: [L, 1, P] f32,
    out_ref: [TB, P] f32 lane-dense slab (first a_dim lanes are real)."""
    h = x_ref[...]                                            # f32 [TB, P]
    for layer in range(n_layers):
        w = w_ref[layer]                                      # bf16 [P, P]
        b = b_ref[layer]                                      # f32  [1, P]
        # bf16 x bf16 -> f32 accumulate: native single-pass MXU mode.
        h = jnp.dot(h.astype(jnp.bfloat16), w,
                    preferred_element_type=jnp.float32) + b
        h = jnp.maximum(h, 0.0)                               # ReLU after every Linear

    # Categorical(logits=h): normalized logits = h - logsumexp(h, -1).
    # Zero-padded lanes (>= a_dim) must not contribute: mask to -inf first.
    col = jax.lax.broadcasted_iota(jnp.int32, h.shape, dimension=1)
    h = jnp.where(col < a_dim, h, -jnp.inf)
    m = jnp.max(h, axis=-1, keepdims=True)
    lse = m + jnp.log(jnp.sum(jnp.exp(h - m), axis=-1, keepdims=True))
    out_ref[...] = h - lse


def pack_policy_params(weights, biases, lane=128):
    """Pack per-layer f32 [in,out] weights / [out] biases into single
    lane-padded buffers: bf16 weights [L, P, P] and f32 biases [L, 1, P].
    Zero padding is mathematically inert for the hidden layers."""
    dims = [weights[0].shape[0]] + [w.shape[1] for w in weights]
    p = max(_round_up(d, lane) for d in dims)
    n = len(weights)
    w_packed = jnp.zeros((n, p, p), dtype=jnp.bfloat16)
    b_packed = jnp.zeros((n, 1, p), dtype=jnp.float32)
    for i, (w, b) in enumerate(zip(weights, biases)):
        w_packed = w_packed.at[i, : w.shape[0], : w.shape[1]].set(
            w.astype(jnp.bfloat16))
        b_packed = b_packed.at[i, 0, : b.shape[-1]].set(
            b.reshape(-1).astype(jnp.float32))
    return w_packed, b_packed


def policy_forward(observation, w_packed, b_packed, a_dim, *, batch_tile=None):
    """Returns normalized logits (log-probs) of the Categorical: [B, a_dim]."""
    B, o_dim = observation.shape
    n_layers, p, _ = w_packed.shape
    observation = observation.astype(jnp.float32)
    if o_dim < p:
        observation = jnp.pad(observation, ((0, 0), (0, p - o_dim)))

    kernel = functools.partial(_policy_mlp_kernel, n_layers, a_dim)
    out_shape = jax.ShapeDtypeStruct((B, p), jnp.float32)

    if batch_tile is None or batch_tile >= B:
        # Latency-bound path: no grid, no pipeline machinery, whole operands
        # resident in VMEM (3 input DMAs total).
        out = pl.pallas_call(
            kernel,
            out_shape=out_shape,
            in_specs=[
                pl.BlockSpec(memory_space=pltpu.MemorySpace.VMEM),
                pl.BlockSpec(memory_space=pltpu.MemorySpace.VMEM),
                pl.BlockSpec(memory_space=pltpu.MemorySpace.VMEM),
            ],
            out_specs=pl.BlockSpec(memory_space=pltpu.MemorySpace.VMEM),
        )(observation, w_packed, b_packed)
    else:
        assert B % batch_tile == 0, "batch must be divisible by batch_tile"
        out = pl.pallas_call(
            kernel,
            out_shape=out_shape,
            grid=(B // batch_tile,),
            in_specs=[
                pl.BlockSpec((batch_tile, p), lambda i: (i, 0)),
                # grid-invariant: weights/biases stay VMEM-resident across steps
                pl.BlockSpec((n_layers, p, p), lambda i: (0, 0, 0)),
                pl.BlockSpec((n_layers, 1, p), lambda i: (0, 0, 0)),
            ],
            out_specs=pl.BlockSpec((batch_tile, p), lambda i: (i, 0)),
            compiler_params=pltpu.CompilerParams(
                dimension_semantics=("parallel",)),  # shards across v7x's 2 TCs
        )(observation, w_packed, b_packed)

    return out[:, :a_dim]


def init_policy_params(key, o_dim, a_dim, hidden_sizes):
    """Matches the module init: U(-0.003, 0.003) weights, zero biases.
    Weights stored as [in, out] (transpose of nn.Linear.weight)."""
    dims = [o_dim] + list(hidden_sizes) + [a_dim]
    weights, biases = [], []
    for i in range(len(dims) - 1):
        key, sub = jax.random.split(key)
        w = jax.random.uniform(sub, (dims[i], dims[i + 1]), dtype=jnp.float32,
                               minval=-0.003, maxval=0.003)
        b = jnp.zeros((dims[i + 1],), dtype=jnp.float32)
        weights.append(w)
        biases.append(b)
    return weights, biases


def _reference_forward(observation, weights, biases):
    """Pure-JAX reference with the same numerics (bf16 MXU inputs, f32 acc)."""
    h = observation.astype(jnp.float32)
    for w, b in zip(weights, biases):
        h = jnp.dot(h.astype(jnp.bfloat16), w.astype(jnp.bfloat16),
                    preferred_element_type=jnp.float32) + b.reshape(1, -1)
        h = jnp.maximum(h, 0.0)
    return h - jax.scipy.special.logsumexp(h, axis=-1, keepdims=True)


if __name__ == "__main__":
    o_dim, a_dim = 32, 16
    hidden_sizes = (64, 64)

    key = jax.random.PRNGKey(0)
    key, obs_key, obs_key2 = jax.random.split(key, 3)

    weights, biases = init_policy_params(key, o_dim, a_dim, hidden_sizes)
    # Pack once; reuse the packed params across every forward call.
    w_packed, b_packed = pack_policy_params(weights, biases)

    # --- small latency-bound path (no grid) ---
    B = 8
    observation = jax.random.normal(obs_key, (B, o_dim), dtype=jnp.float32)
    log_probs = policy_forward(observation, w_packed, b_packed, a_dim)
    log_probs = jax.block_until_ready(log_probs)

    ref = _reference_forward(observation, weights, biases)
    assert log_probs.shape == (B, a_dim)
    assert jnp.allclose(log_probs, ref, atol=1e-4, rtol=1e-4)
    assert jnp.allclose(jnp.exp(log_probs).sum(-1), 1.0, atol=1e-4)

    # --- batch-tiled path (grid over batch, "parallel" for megacore) ---
    B2, TB = 256, 128
    observation2 = jax.random.normal(obs_key2, (B2, o_dim), dtype=jnp.float32)
    log_probs2 = policy_forward(observation2, w_packed, b_packed, a_dim,
                                batch_tile=TB)
    log_probs2 = jax.block_until_ready(log_probs2)

    ref2 = _reference_forward(observation2, weights, biases)
    assert log_probs2.shape == (B2, a_dim)
    assert jnp.allclose(log_probs2, ref2, atol=1e-4, rtol=1e-4)
    assert jnp.allclose(jnp.exp(log_probs2).sum(-1), 1.0, atol=1e-4)

    print("KERNEL_OK")
</pallas_src>

<mosaic_0001>
module attributes {stable_mosaic.version = 11 : i64} {
  func.func @_policy_mlp_kernel(%arg0: memref<8x128xf32, #tpu.memory_space<vmem>>, %arg1: memref<3x128x128xbf16, #tpu.memory_space<vmem>>, %arg2: memref<3x1x128xf32, #tpu.memory_space<vmem>>, %arg3: memref<8x128xf32, #tpu.memory_space<vmem>>) attributes {dimension_semantics = [], scalar_prefetch = 0 : i64, scratch_operands = 0 : i64, tpu.core_type = #tpu.core_type<tc>} {
    %c0 = arith.constant 0 : index
    %c0_0 = arith.constant 0 : index
    %0 = vector.load %arg0[%c0, %c0_0] : memref<8x128xf32, #tpu.memory_space<vmem>>, vector<8x128xf32>
    %c0_1 = arith.constant 0 : index
    %c0_2 = arith.constant 0 : index
    %c0_3 = arith.constant 0 : index
    %1 = vector.load %arg1[%c0_1, %c0_2, %c0_3] : memref<3x128x128xbf16, #tpu.memory_space<vmem>>, vector<1x128x128xbf16>
    %2 = vector.shape_cast %1 : vector<1x128x128xbf16> to vector<128x128xbf16>
    %c0_4 = arith.constant 0 : index
    %c0_5 = arith.constant 0 : index
    %c0_6 = arith.constant 0 : index
    %3 = vector.load %arg2[%c0_4, %c0_5, %c0_6] : memref<3x1x128xf32, #tpu.memory_space<vmem>>, vector<1x1x128xf32>
    %4 = vector.shape_cast %3 : vector<1x1x128xf32> to vector<1x128xf32>
    %5 = arith.truncf %0 : vector<8x128xf32> to vector<8x128xbf16>
    %cst = arith.constant dense<0.000000e+00> : vector<8x128xf32>
    %6 = tpu.matmul %5, %2, %cst {dimension_numbers = #tpu.dot_dimension_numbers<[1], [0], [0], [1], [0, 0, 1, 1], [], []>} : vector<8x128xbf16>, vector<128x128xbf16>, vector<8x128xf32> -> vector<8x128xf32>
    %7 = vector.broadcast %4 : vector<1x128xf32> to vector<8x128xf32>
    %8 = arith.addf %6, %7 : vector<8x128xf32>
    %cst_7 = arith.constant 0.000000e+00 : f32
    %9 = vector.broadcast %cst_7 : f32 to vector<8x128xf32>
    %10 = arith.maximumf %8, %9 : vector<8x128xf32>
    %c1 = arith.constant 1 : index
    %c0_8 = arith.constant 0 : index
    %c0_9 = arith.constant 0 : index
    %11 = vector.load %arg1[%c1, %c0_8, %c0_9] : memref<3x128x128xbf16, #tpu.memory_space<vmem>>, vector<1x128x128xbf16>
    %12 = vector.shape_cast %11 : vector<1x128x128xbf16> to vector<128x128xbf16>
    %c1_10 = arith.constant 1 : index
    %c0_11 = arith.constant 0 : index
    %c0_12 = arith.constant 0 : index
    %13 = vector.load %arg2[%c1_10, %c0_11, %c0_12] : memref<3x1x128xf32, #tpu.memory_space<vmem>>, vector<1x1x128xf32>
    %14 = vector.shape_cast %13 : vector<1x1x128xf32> to vector<1x128xf32>
    %15 = arith.truncf %10 : vector<8x128xf32> to vector<8x128xbf16>
    %cst_13 = arith.constant dense<0.000000e+00> : vector<8x128xf32>
    %16 = tpu.matmul %15, %12, %cst_13 {dimension_numbers = #tpu.dot_dimension_numbers<[1], [0], [0], [1], [0, 0, 1, 1], [], []>} : vector<8x128xbf16>, vector<128x128xbf16>, vector<8x128xf32> -> vector<8x128xf32>
    %17 = vector.broadcast %14 : vector<1x128xf32> to vector<8x128xf32>
    %18 = arith.addf %16, %17 : vector<8x128xf32>
    %cst_14 = arith.constant 0.000000e+00 : f32
    %19 = vector.broadcast %cst_14 : f32 to vector<8x128xf32>
    %20 = arith.maximumf %18, %19 : vector<8x128xf32>
    %c2 = arith.constant 2 : index
    %c0_15 = arith.constant 0 : index
    %c0_16 = arith.constant 0 : index
    %21 = vector.load %arg1[%c2, %c0_15, %c0_16] : memref<3x128x128xbf16, #tpu.memory_space<vmem>>, vector<1x128x128xbf16>
    %22 = vector.shape_cast %21 : vector<1x128x128xbf16> to vector<128x128xbf16>
    %c2_17 = arith.constant 2 : index
    %c0_18 = arith.constant 0 : index
    %c0_19 = arith.constant 0 : index
    %23 = vector.load %arg2[%c2_17, %c0_18, %c0_19] : memref<3x1x128xf32, #tpu.memory_space<vmem>>, vector<1x1x128xf32>
    %24 = vector.shape_cast %23 : vector<1x1x128xf32> to vector<1x128xf32>
    %25 = arith.truncf %20 : vector<8x128xf32> to vector<8x128xbf16>
    %cst_20 = arith.constant dense<0.000000e+00> : vector<8x128xf32>
    %26 = tpu.matmul %25, %22, %cst_20 {dimension_numbers = #tpu.dot_dimension_numbers<[1], [0], [0], [1], [0, 0, 1, 1], [], []>} : vector<8x128xbf16>, vector<128x128xbf16>, vector<8x128xf32> -> vector<8x128xf32>
    %27 = vector.broadcast %24 : vector<1x128xf32> to vector<8x128xf32>
    %28 = arith.addf %26, %27 : vector<8x128xf32>
    %cst_21 = arith.constant 0.000000e+00 : f32
    %29 = vector.broadcast %cst_21 : f32 to vector<8x128xf32>
    %30 = arith.maximumf %28, %29 : vector<8x128xf32>
    %31 = tpu.iota {dimensions = array<i32: 1>} : vector<8x128xi32>
    %c16_i32 = arith.constant 16 : i32
    %32 = vector.broadcast %c16_i32 : i32 to vector<8x128xi32>
    %33 = arith.cmpi slt, %31, %32 : vector<8x128xi32>
    %cst_22 = arith.constant 0xFF800000 : f32
    %34 = vector.broadcast %cst_22 : f32 to vector<8x128xf32>
    %35 = arith.select %33, %30, %34 : vector<8x128xi1>, vector<8x128xf32>
    %cst_23 = arith.constant dense<0xFF800000> : vector<8xf32>
    %36 = vector.multi_reduction <maximumf>, %35, %cst_23 [1] : vector<8x128xf32> to vector<8xf32>
    %37 = vector.shape_cast %36 : vector<8xf32> to vector<8x1xf32>
    %38 = vector.broadcast %37 : vector<8x1xf32> to vector<8x128xf32>
    %39 = arith.subf %35, %38 : vector<8x128xf32>
    %40 = math.exp %39 : vector<8x128xf32>
    %cst_24 = arith.constant dense<0.000000e+00> : vector<8xf32>
    %41 = vector.multi_reduction <add>, %40, %cst_24 [1] : vector<8x128xf32> to vector<8xf32>
    %42 = vector.shape_cast %41 : vector<8xf32> to vector<8x1xf32>
    %43 = math.log %42 : vector<8x1xf32>
    %44 = arith.addf %37, %43 : vector<8x1xf32>
    %45 = vector.broadcast %44 : vector<8x1xf32> to vector<8x128xf32>
    %46 = arith.subf %35, %45 : vector<8x128xf32>
    %c0_25 = arith.constant 0 : index
    %c0_26 = arith.constant 0 : index
    %47 = vector.load %arg3[%c0_25, %c0_26] : memref<8x128xf32, #tpu.memory_space<vmem>>, vector<8x128xf32>
    tpu.vector_store %arg3[%c0_25, %c0_26], %46 {strides = array<i32>} : memref<8x128xf32, #tpu.memory_space<vmem>>, vector<8x128xf32>,
    return
  }
}

</mosaic_0001>

<llo_original>
// kernel: tpu_custom_call.1
$region0: #{tpu_custom_call.1}
  #allocation0 [shape = 'u32[]', space=smem, size = 0x4, offset = 0x4, fixed_abs, tag = 'smem constant byte address 0x4 - core index']
  #allocation1 [shape = 'u32[72,128]{1,0:T(1,128)}', space=vmem, size = 0x9000, scoped, tag = 'internal scratch']
  %s0 = inlined_call_operand.hbm [shape: f32[8,128], index: 0, kind: input, shape index: {}]
  %s1 = inlined_call_operand.hbm [shape: bf16[3,128,128], index: 1, kind: input, shape index: {}]
  %s2 = inlined_call_operand.hbm [shape: f32[3,1,128], index: 2, kind: input, shape index: {}]
  %s3 = inlined_call_operand.hbm [shape: f32[8,128], index: 3, kind: output, shape index: {}]
  %s4 = sld [smem:[#allocation0]]
  $region34: #{tpu_custom_call.1} parent=0
    _
  %s6 = ssub.s32 1, %s4
  %s7 = scalar_select 0, %s6, %s4
  $region1: #{tpu_custom_call.1} parent=0
    #allocation2 [shape = 'u8[4096]{0}', space=vmem, size = 0x1000, scoped, tag = 'input window, operand 0, single buffered']
    #allocation3 [shape = 's32[1]{0}', space=sflag, size = 0x4, scoped, tag = 'scoped memory for tpu_custom_call.1']
    #allocation4 [shape = 's32[1]{0}', space=sflag, size = 0x4, scoped, tag = 'scoped memory for tpu_custom_call.1']
    #allocation5 [shape = 'u8[98304]{0}', space=vmem, size = 0x18000, scoped, tag = 'input window, operand 1, single buffered']
    #allocation6 [shape = 's32[1]{0}', space=sflag, size = 0x4, scoped, tag = 'scoped memory for tpu_custom_call.1']
    #allocation7 [shape = 'u8[1536]{0}', space=vmem, size = 0x800, scoped, tag = 'input window, operand 2, single buffered']
    #allocation8 [shape = 'u8[4096]{0}', space=vmem, size = 0x1000, scoped, tag = 'output window, operand 0, single buffered']
    %8 = vsyncpa [#allocation3], 0
    %9 = vsyncpa [#allocation6], 0
    %10 = vsyncpa [#allocation4], 0
    // Predicated region
    $region2: #{tpu_custom_call.1} parent=1 // pred_check
      _
    $region3: #{tpu_custom_call.1} parent=1 // pred_check_branch
      %12 = sbr.rel (0) target = $region5
    $region4: #{tpu_custom_call.1} parent=1 // pred_region
      %14 = vsyncadd [#allocation3], 0
      %s16 = sshll.u32 %s0, 4
      %s17 = int_to_ptr.hbm [resolvable:$true] %s16
      %s18 = sshll.u32 [#allocation2], 4
      %s19 = int_to_ptr.vmem [resolvable:$true] %s18
      %21 = dma.hbm_to_vmem [thread:$0]  %s17, 128, %s19, [#allocation3]
    $region5: #{tpu_custom_call.1} parent=1 // pred_fallthru
      _
    // Predicated region
    $region6: #{tpu_custom_call.1} parent=1 // pred_check
      _
    $region7: #{tpu_custom_call.1} parent=1 // pred_check_branch
      %23 = sbr.rel (0) target = $region9
    $region8: #{tpu_custom_call.1} parent=1 // pred_region
      %25 = vsyncadd [#allocation6], 0
      %s26 = sshll.u32 %s1, 4
      %s27 = int_to_ptr.hbm [resolvable:$true] %s26
      %s28 = sshll.u32 [#allocation5], 4
      %s29 = int_to_ptr.vmem [resolvable:$true] %s28
      %34 = dma.hbm_to_vmem [thread:$0]  %s27, 3072, %s29, [#allocation6], 64, 64, 4
    $region9: #{tpu_custom_call.1} parent=1 // pred_fallthru
      _
    // Predicated region
    $region10: #{tpu_custom_call.1} parent=1 // pred_check
      _
    $region11: #{tpu_custom_call.1} parent=1 // pred_check_branch
      %36 = sbr.rel (0) target = $region13
    $region12: #{tpu_custom_call.1} parent=1 // pred_region
      %38 = vsyncadd [#allocation6], 0
      %s39 = sshll.u32 %s2, 4
      %s40 = int_to_ptr.hbm [resolvable:$true] %s39
      %s41 = sshll.u32 [#allocation7], 4
      %s42 = int_to_ptr.vmem [resolvable:$true] %s41
      %47 = dma.hbm_to_vmem [thread:$0]  %s40, 48, %s42, [#allocation6], 16, 16, 1
    $region13: #{tpu_custom_call.1} parent=1 // pred_fallthru
      _
    // Predicated region
    $region14: #{tpu_custom_call.1} parent=1 // pred_check
      _
    $region15: #{tpu_custom_call.1} parent=1 // pred_check_branch
      %49 = sbr.rel (0) target = $region17
    $region16: #{tpu_custom_call.1} parent=1 // pred_region
      %51 = dma.done [#allocation3], 128
    $region17: #{tpu_custom_call.1} parent=1 // pred_fallthru
      _
    // Predicated region
    $region18: #{tpu_custom_call.1} parent=1 // pred_check
      _
    $region19: #{tpu_custom_call.1} parent=1 // pred_check_branch
      %53 = sbr.rel (0) target = $region21
    $region20: #{tpu_custom_call.1} parent=1 // pred_region
      %55 = dma.done [#allocation6], 3072
    $region21: #{tpu_custom_call.1} parent=1 // pred_fallthru
      _
    // Predicated region
    $region22: #{tpu_custom_call.1} parent=1 // pred_check
      _
    $region23: #{tpu_custom_call.1} parent=1 // pred_check_branch
      %57 = sbr.rel (0) target = $region25
    $region24: #{tpu_custom_call.1} parent=1 // pred_region
      %59 = dma.done [#allocation6], 48
    $region25: #{tpu_custom_call.1} parent=1 // pred_fallthru
      _
    %v60 = vld [vmem:[#allocation2] sm:$0xff]
    %v61 = vld [vmem:[#allocation5] sm:$0xf]
    %v62 = vld [vmem:[#allocation5 + $0x4] sm:$0xf]
    %v63 = vld [vmem:[#allocation5 + $0x8] sm:$0xf]
    %v64 = vld [vmem:[#allocation5 + $0xc] sm:$0xf]
    %v65 = vld [vmem:[#allocation5 + $0x10] sm:$0xf]
    %v66 = vld [vmem:[#allocation5 + $0x14] sm:$0xf]
    %v67 = vld [vmem:[#allocation5 + $0x18] sm:$0xf]
    %v68 = vld [vmem:[#allocation5 + $0x1c] sm:$0xf]
    %v69 = vld [vmem:[#allocation5 + $0x20] sm:$0xf]
    %v70 = vld [vmem:[#allocation5 + $0x24] sm:$0xf]
    %v71 = vld [vmem:[#allocation5 + $0x28] sm:$0xf]
    %v72 = vld [vmem:[#allocation5 + $0x2c] sm:$0xf]
    %v73 = vld [vmem:[#allocation5 + $0x30] sm:$0xf]
    %v74 = vld [vmem:[#allocation5 + $0x34] sm:$0xf]
    %v75 = vld [vmem:[#allocation5 + $0x38] sm:$0xf]
    %v76 = vld [vmem:[#allocation5 + $0x3c] sm:$0xf]
    %v77 = vld [vmem:[#allocation7] sm:$0x1]
    %v78 = vpack.c.bf16 %v60, %v60
    %v80 = vperm.slane %v77, 0
    %v98 = vunpack.c.l.b16 %v61
    %v99 = vunpack.c.l.b16 %v62
    %v100 = vunpack.c.l.b16 %v63
    %v101 = vunpack.c.l.b16 %v64
    %v102 = vunpack.c.l.b16 %v65
    %v103 = vunpack.c.l.b16 %v66
    %v104 = vunpack.c.l.b16 %v67
    %v105 = vunpack.c.l.b16 %v68
    %v106 = vunpack.c.l.b16 %v69
    %v107 = vunpack.c.l.b16 %v70
    %v108 = vunpack.c.l.b16 %v71
    %v109 = vunpack.c.l.b16 %v72
    %v110 = vunpack.c.l.b16 %v73
    %v111 = vunpack.c.l.b16 %v74
    %v112 = vunpack.c.l.b16 %v75
    %v113 = vunpack.c.l.b16 %v76
    %v114 = vpack.c.b16 %v99, %v98
    %v115 = vpack.c.b16 %v101, %v100
    %v116 = vpack.c.b16 %v103, %v102
    %v117 = vpack.c.b16 %v105, %v104
    %v118 = vpack.c.b16 %v107, %v106
    %v119 = vpack.c.b16 %v109, %v108
    %v120 = vpack.c.b16 %v111, %v110
    %v121 = vpack.c.b16 %v113, %v112
    %130 = vmatpush.bf16.msra.mxu0 %v121
    %131 = vmatpush.bf16.msra.mxu0 %v120
    %132 = vmatpush.bf16.msra.mxu0 %v119
    %133 = vmatpush.bf16.msra.mxu0 %v118
    %134 = vmatpush.bf16.msra.mxu0 %v117
    %135 = vmatpush.bf16.msra.mxu0 %v116
    %136 = vmatpush.bf16.msra.mxu0 %v115
    %137 = vmatpush.bf16.msra.mxu0 %v114
    %138 = vmatmul.bf16.gmra.mxu0 %v78
    %v139 = vpop.f32.mrf.mxu0
    %v140 = vadd.f32 %v80, %v139
    %v141 = vpop.f32.mrf.mxu0
    %142 = vdwg.mxu0
    %v143 = vmax.f32 %v140, 0.0
    %s144 = scalar_lea.vmem [#allocation5], 64
    %v145 = vld [vmem:[%s144] sm:$0xf]
    %v146 = vld [vmem:[%s144 + $0x4] sm:$0xf]
    %v147 = vld [vmem:[%s144 + $0x8] sm:$0xf]
    %v148 = vld [vmem:[%s144 + $0xc] sm:$0xf]
    %v149 = vld [vmem:[%s144 + $0x10] sm:$0xf]
    %v150 = vld [vmem:[%s144 + $0x14] sm:$0xf]
    %v151 = vld [vmem:[%s144 + $0x18] sm:$0xf]
    %v152 = vld [vmem:[%s144 + $0x1c] sm:$0xf]
    %v153 = vld [vmem:[%s144 + $0x20] sm:$0xf]
    %v154 = vld [vmem:[%s144 + $0x24] sm:$0xf]
    %v155 = vld [vmem:[%s144 + $0x28] sm:$0xf]
    %v156 = vld [vmem:[%s144 + $0x2c] sm:$0xf]
    %v157 = vld [vmem:[%s144 + $0x30] sm:$0xf]
    %v158 = vld [vmem:[%s144 + $0x34] sm:$0xf]
    %v159 = vld [vmem:[%s144 + $0x38] sm:$0xf]
    %v160 = vld [vmem:[%s144 + $0x3c] sm:$0xf]
    %s161 = scalar_lea.vmem [#allocation7], 1
    %v162 = vld [vmem:[%s161] sm:$0x1]
    %v163 = vpack.c.bf16 %v143, %v143
    %v165 = vperm.slane %v162, 0
    %v183 = vunpack.c.l.b16 %v145
    %v184 = vunpack.c.l.b16 %v146
    %v185 = vunpack.c.l.b16 %v147
    %v186 = vunpack.c.l.b16 %v148
    %v187 = vunpack.c.l.b16 %v149
    %v188 = vunpack.c.l.b16 %v150
    %v189 = vunpack.c.l.b16 %v151
    %v190 = vunpack.c.l.b16 %v152
    %v191 = vunpack.c.l.b16 %v153
    %v192 = vunpack.c.l.b16 %v154
    %v193 = vunpack.c.l.b16 %v155
    %v194 = vunpack.c.l.b16 %v156
    %v195 = vunpack.c.l.b16 %v157
    %v196 = vunpack.c.l.b16 %v158
    %v197 = vunpack.c.l.b16 %v159
    %v198 = vunpack.c.l.b16 %v160
    %v199 = vpack.c.b16 %v184, %v183
    %v200 = vpack.c.b16 %v186, %v185
    %v201 = vpack.c.b16 %v188, %v187
    %v202 = vpack.c.b16 %v190, %v189
    %v203 = vpack.c.b16 %v192, %v191
    %v204 = vpack.c.b16 %v194, %v193
    %v205 = vpack.c.b16 %v196, %v195
    %v206 = vpack.c.b16 %v198, %v197
    %215 = vmatpush.bf16.msra.mxu0 %v206
    %216 = vmatpush.bf16.msra.mxu0 %v205
    %217 = vmatpush.bf16.msra.mxu0 %v204
    %218 = vmatpush.bf16.msra.mxu0 %v203
    %219 = vmatpush.bf16.msra.mxu0 %v202
    %220 = vmatpush.bf16.msra.mxu0 %v201
    %221 = vmatpush.bf16.msra.mxu0 %v200
    %222 = vmatpush.bf16.msra.mxu0 %v199
    %223 = vmatmul.bf16.gmra.mxu0 %v163
    %v224 = vpop.f32.mrf.mxu0
    %v225 = vadd.f32 %v165, %v224
    %v226 = vpop.f32.mrf.mxu0
    %227 = vdwg.mxu0
    %v228 = vmax.f32 %v225, 0.0
    %s229 = scalar_lea.vmem [#allocation5], 128
    %v230 = vld [vmem:[%s229] sm:$0xf]
    %v231 = vld [vmem:[%s229 + $0x4] sm:$0xf]
    %v232 = vld [vmem:[%s229 + $0x8] sm:$0xf]
    %v233 = vld [vmem:[%s229 + $0xc] sm:$0xf]
    %v234 = vld [vmem:[%s229 + $0x10] sm:$0xf]
    %v235 = vld [vmem:[%s229 + $0x14] sm:$0xf]
    %v236 = vld [vmem:[%s229 + $0x18] sm:$0xf]
    %v237 = vld [vmem:[%s229 + $0x1c] sm:$0xf]
    %v238 = vld [vmem:[%s229 + $0x20] sm:$0xf]
    %v239 = vld [vmem:[%s229 + $0x24] sm:$0xf]
    %v240 = vld [vmem:[%s229 + $0x28] sm:$0xf]
    %v241 = vld [vmem:[%s229 + $0x2c] sm:$0xf]
    %v242 = vld [vmem:[%s229 + $0x30] sm:$0xf]
    %v243 = vld [vmem:[%s229 + $0x34] sm:$0xf]
    %v244 = vld [vmem:[%s229 + $0x38] sm:$0xf]
    %v245 = vld [vmem:[%s229 + $0x3c] sm:$0xf]
    %s246 = scalar_lea.vmem [#allocation7], 2
    %v247 = vld [vmem:[%s246] sm:$0x1]
    %v248 = vpack.c.bf16 %v228, %v228
    %v250 = vperm.slane %v247, 0
    %v268 = vunpack.c.l.b16 %v230
    %v269 = vunpack.c.l.b16 %v231
    %v270 = vunpack.c.l.b16 %v232
    %v271 = vunpack.c.l.b16 %v233
    %v272 = vunpack.c.l.b16 %v234
    %v273 = vunpack.c.l.b16 %v235
    %v274 = vunpack.c.l.b16 %v236
    %v275 = vunpack.c.l.b16 %v237
    %v276 = vunpack.c.l.b16 %v238
    %v277 = vunpack.c.l.b16 %v239
    %v278 = vunpack.c.l.b16 %v240
    %v279 = vunpack.c.l.b16 %v241
    %v280 = vunpack.c.l.b16 %v242
    %v281 = vunpack.c.l.b16 %v243
    %v282 = vunpack.c.l.b16 %v244
    %v283 = vunpack.c.l.b16 %v245
    %v284 = vpack.c.b16 %v269, %v268
    %v285 = vpack.c.b16 %v271, %v270
    %v286 = vpack.c.b16 %v273, %v272
    %v287 = vpack.c.b16 %v275, %v274
    %v288 = vpack.c.b16 %v277, %v276
    %v289 = vpack.c.b16 %v279, %v278
    %v290 = vpack.c.b16 %v281, %v280
    %v291 = vpack.c.b16 %v283, %v282
    %300 = vmatpush.bf16.msra.mxu0 %v291
    %301 = vmatpush.bf16.msra.mxu0 %v290
    %302 = vmatpush.bf16.msra.mxu0 %v289
    %303 = vmatpush.bf16.msra.mxu0 %v288
    %304 = vmatpush.bf16.msra.mxu0 %v287
    %305 = vmatpush.bf16.msra.mxu0 %v286
    %306 = vmatpush.bf16.msra.mxu0 %v285
    %307 = vmatpush.bf16.msra.mxu0 %v284
    %308 = vmatmul.bf16.gmra.mxu0 %v248
    %v309 = vpop.f32.mrf.mxu0
    %v310 = vadd.f32 %v250, %v309
    %v311 = vpop.f32.mrf.mxu0
    %312 = vdwg.mxu0
    %v313 = vmax.f32 %v310, 0.0
    %v314 = vlaneseq
    %v315 = vand.u32 %v314, 127
    %vm316 = vcmp.lt.s32.totalorder %v315, 16
    %v317 = vsel %vm316, %v313, -inf
    %318 = vmax.xlane.f32.xlu0 %v317
    %v319 = vpop.xlane.xlu0 %318
    %v320 = vsub.f32 %v317, %v319
    %v321 = vmul.f32 %v320, 1.442695
    %v322 = vpow.pop %v321
    %323 = vadd.xlane.f32.xlu0 %v322
    %v324 = vpop.xlane.xlu0 %323
    %v325 = vlog2.pop %v324
    %v326 = vmul.f32 %v325, 0.6931472
    %v327 = vadd.f32 %v319, %v326
    %v328 = vsub.f32 %v317, %v327
    %329 = vst [vmem:[#allocation8] sm:$0xff] %v328
    // Predicated region
    $region26: #{tpu_custom_call.1} parent=1 // pred_check
      _
    $region27: #{tpu_custom_call.1} parent=1 // pred_check_branch
      %331 = sbr.rel (0) target = $region29
    $region28: #{tpu_custom_call.1} parent=1 // pred_region
      %333 = vsyncadd [#allocation4], 0
      %s335 = sshll.u32 [#allocation8], 4
      %s336 = int_to_ptr.vmem [resolvable:$true] %s335
      %s337 = sshll.u32 %s3, 4
      %s338 = int_to_ptr.hbm [resolvable:$true] %s337
      %340 = dma.vmem_to_hbm [thread:$0]  %s336, 128, %s338, [#allocation4]
    $region29: #{tpu_custom_call.1} parent=1 // pred_fallthru
      _
    // Predicated region
    $region30: #{tpu_custom_call.1} parent=1 // pred_check
      _
    $region31: #{tpu_custom_call.1} parent=1 // pred_check_branch
      %342 = sbr.rel (0) target = $region33
    $region32: #{tpu_custom_call.1} parent=1 // pred_region
      %344 = dma.done [#allocation4], 128
    $region33: #{tpu_custom_call.1} parent=1 // pred_fallthru
      _
    %345 = vsyncpa [#allocation3], 1
    %346 = vsyncpa [#allocation6], 1
    %347 = vsyncpa [#allocation4], 1

</llo_original>
